<compile_context>
chip_gen: v6e
topology: v6e:2x2x1
jax: 0.10.0
libtpu: 0.0.40
codegen_flags: <defaults>
</compile_context>

<pallas_src>
import functools

import jax
import jax.numpy as jnp
from jax import lax
from jax.experimental import pallas as pl
from jax.experimental.pallas import tpu as pltpu

_NSEM = 16                     # in-flight row DMAs (HBM-gather fallback path)
_VMEM_TABLE_BYTES = 12 << 20   # table-resident fast path when table <= this


def _round_up(x, m):
    return ((x + m - 1) // m) * m


# -----------------------------------------------------------------------------
# Fast path: table resident in VMEM (constant block index => fetched once),
# gather is an on-chip dynamic row slice per label.
# -----------------------------------------------------------------------------
def _gather_vmem_kernel(eff_ref, table_ref, out_ref, *, rows_per_tile):
    base = pl.program_id(0) * rows_per_tile

    def body(r, carry):
        idx = eff_ref[base + r]                                  # scalar (SMEM)
        out_ref[pl.ds(r, 1), :] = table_ref[pl.ds(idx, 1), :]    # (1, H) row
        return carry

    lax.fori_loop(0, rows_per_tile, body, 0, unroll=min(8, rows_per_tile))


# -----------------------------------------------------------------------------
# Fallback for very large tables: table stays in HBM (memory_space=pl.ANY) and
# each row is DMA'd straight into the (TB, H) VMEM output block, keeping up to
# _NSEM row copies in flight.
# -----------------------------------------------------------------------------
def _gather_hbm_kernel(eff_ref, table_ref, out_ref, sems, *, rows_per_tile):
    base = pl.program_id(0) * rows_per_tile
    n_inflight = min(_NSEM, rows_per_tile)

    def start_row(r):
        idx = eff_ref[base + r]
        pltpu.make_async_copy(
            table_ref.at[pl.ds(idx, 1)],             # (1, H) HBM row
            out_ref.at[pl.ds(r, 1)],                 # (1, H) VMEM output row
            sems.at[r % _NSEM],
        ).start()

    def wait_row(r):
        # Constant-shape wait descriptor: only the semaphore and transfer size
        # matter, so avoid re-reading eff_ref (SMEM) behind the .wait().
        pltpu.make_async_copy(
            table_ref.at[pl.ds(0, 1)],
            out_ref.at[pl.ds(0, 1)],
            sems.at[r % _NSEM],
        ).wait()

    # Prologue: fill the in-flight window.
    for r in range(n_inflight):
        start_row(r)

    # Steady state: retire row r first, THEN reuse its semaphore slot.
    def body(r, carry):
        wait_row(r)

        @pl.when(r + n_inflight < rows_per_tile)
        def _():
            start_row(r + n_inflight)

        return carry

    lax.fori_loop(0, rows_per_tile, body, 0, unroll=min(8, rows_per_tile))


def _embedding_gather(eff_labels, table, *, rows_per_tile=None,
                      vmem_table_bytes=_VMEM_TABLE_BYTES):
    """out[b, :] = table[eff_labels[b], :] via a Pallas gather kernel."""
    (B,) = eff_labels.shape
    V, H = table.shape
    itemsize = jnp.dtype(table.dtype).itemsize
    table_bytes = V * H * itemsize

    if rows_per_tile is None:
        # Large tiles amortize the ~0.35us per-grid-step overhead, but keep
        # >= 2 grid steps when B > 8 so megacore (v7x) can split the batch.
        rows_per_tile = min(512, _round_up(B, 8))
        if B > 8:
            rows_per_tile = min(rows_per_tile, _round_up((B + 1) // 2, 8))
    # Keep a single output block modest so double-buffering never blows VMEM.
    max_rows_by_vmem = max(8, ((4 << 20) // max(1, H * itemsize)) // 8 * 8)
    rows_per_tile = max(8, _round_up(min(rows_per_tile, max_rows_by_vmem), 8))

    # Defensive clip: neither gather path has a runtime bounds check.
    eff = jnp.clip(eff_labels.astype(jnp.int32), 0, V - 1)

    b_pad = _round_up(B, rows_per_tile)
    if b_pad != B:
        eff = jnp.concatenate([eff, jnp.zeros((b_pad - B,), jnp.int32)])
    num_tiles = b_pad // rows_per_tile
    out_block_bytes = rows_per_tile * H * itemsize

    if table_bytes <= vmem_table_bytes:
        kernel = functools.partial(_gather_vmem_kernel, rows_per_tile=rows_per_tile)
        in_specs = [pl.BlockSpec((V, H), lambda t, eff_smem: (0, 0))]  # resident
        scratch_shapes = []
        vmem_bytes = int(2 * table_bytes + 2 * out_block_bytes + (2 << 20))
        bytes_accessed = int(table_bytes + b_pad * H * itemsize + b_pad * 4)
    else:
        kernel = functools.partial(_gather_hbm_kernel, rows_per_tile=rows_per_tile)
        in_specs = [pl.BlockSpec(memory_space=pl.ANY)]                  # stay in HBM
        scratch_shapes = [pltpu.SemaphoreType.DMA((_NSEM,))]
        vmem_bytes = int(4 * out_block_bytes + (4 << 20))
        bytes_accessed = int(2 * b_pad * H * itemsize + b_pad * 4)

    out = pl.pallas_call(
        kernel,
        out_shape=jax.ShapeDtypeStruct((b_pad, H), table.dtype),
        grid_spec=pltpu.PrefetchScalarGridSpec(
            num_scalar_prefetch=1,                   # effective labels -> SMEM
            grid=(num_tiles,),
            in_specs=in_specs,
            out_specs=pl.BlockSpec((rows_per_tile, H), lambda t, eff_smem: (t, 0)),
            scratch_shapes=scratch_shapes,
        ),
        compiler_params=pltpu.CompilerParams(
            dimension_semantics=("parallel",),       # shard batch tiles (v7x 2 TCs)
            vmem_limit_bytes=min(vmem_bytes, 60 << 20),
        ),
        cost_estimate=pl.CostEstimate(
            flops=0, transcendentals=0, bytes_accessed=bytes_accessed),
    )(eff, table)
    return out if b_pad == B else out[:B]


def label_embedder_forward(labels, table, *, num_classes, dropout_prob, train,
                           force_drop_ids=None, rng_key=None):
    """Forward pass matching LabelEmbedder.forward semantics.

    labels: (B,) int32 class ids in [0, num_classes)
    table:  (num_classes + use_cfg, H) float32 embedding table
    """
    B = labels.shape[0]
    V, _ = table.shape
    labels = labels.astype(jnp.int32)
    use_dropout = dropout_prob > 0

    if (train and use_dropout) or (force_drop_ids is not None):
        if V <= num_classes:
            raise ValueError(
                "Label dropout requested but the embedding table has no CFG row "
                "(expected num_classes + 1 rows).")
        if force_drop_ids is None:
            assert rng_key is not None, "rng_key required for train-time label dropout"
            drop_ids = jax.random.uniform(rng_key, (B,)) < dropout_prob
        else:
            drop_ids = force_drop_ids == 1
        labels = jnp.where(drop_ids, jnp.int32(num_classes), labels)  # token_drop

    return _embedding_gather(labels, table)


if __name__ == "__main__":
    num_classes = 16
    hidden_size = 128
    dropout_prob = 0.1
    batch = 8

    key = jax.random.PRNGKey(0)
    k_table, k_labels, k_drop, k_labels2 = jax.random.split(key, 4)

    # nn.Embedding(num_classes + 1, hidden_size): deterministic synthetic weights.
    use_cfg = 1 if dropout_prob > 0 else 0
    table = jax.random.normal(k_table, (num_classes + use_cfg, hidden_size),
                              dtype=jnp.float32) * 0.02
    labels = jax.random.randint(k_labels, (batch,), 0, num_classes, dtype=jnp.int32)

    # 1) Train-mode forward with label dropout (classifier-free guidance path).
    out = jax.block_until_ready(label_embedder_forward(
        labels, table, num_classes=num_classes, dropout_prob=dropout_prob,
        train=True, rng_key=k_drop))
    drop_ref = jax.random.uniform(k_drop, (batch,)) < dropout_prob
    ref = table[jnp.where(drop_ref, num_classes, labels)]
    assert out.shape == (batch, hidden_size) and out.dtype == jnp.float32
    assert jnp.array_equal(out, ref), "train-path mismatch vs reference lookup"

    # 2) Eval path (no dropout).
    out_eval = jax.block_until_ready(
        label_embedder_forward(labels, table, num_classes=num_classes,
                               dropout_prob=dropout_prob, train=False))
    assert jnp.array_equal(out_eval, table[labels])

    # 3) force_drop_ids path.
    force = jnp.array([1, 0, 1, 0, 0, 0, 1, 0], dtype=jnp.int32)
    out_force = jax.block_until_ready(
        label_embedder_forward(labels, table, num_classes=num_classes,
                               dropout_prob=dropout_prob, train=False,
                               force_drop_ids=force))
    assert jnp.array_equal(out_force, table[jnp.where(force == 1, num_classes, labels)])

    # 4) Explicitly exercise the HBM row-DMA fallback path (large-table mode).
    out_hbm = jax.block_until_ready(
        _embedding_gather(labels, table, vmem_table_bytes=0))
    assert jnp.array_equal(out_hbm, table[labels]), "HBM-gather path mismatch"

    # 5) Multi-tile + padded-last-tile case (B not a multiple of the tile).
    labels24 = jax.random.randint(k_labels2, (24,), 0, num_classes, dtype=jnp.int32)
    out24 = jax.block_until_ready(_embedding_gather(labels24, table))
    assert out24.shape == (24, hidden_size)
    assert jnp.array_equal(out24, table[labels24]), "multi-tile path mismatch"

    print("KERNEL_OK")
</pallas_src>

<mosaic_0001>
module attributes {stable_mosaic.version = 11 : i64} {
  func.func @_gather_vmem_kernel(%arg0: i32, %arg1: memref<8xi32, #tpu.memory_space<smem>>, %arg2: memref<17x128xf32, #tpu.memory_space<vmem>>, %arg3: memref<8x128xf32, #tpu.memory_space<vmem>>) attributes {dimension_semantics = [#tpu.dimension_semantics<parallel>], iteration_bounds = array<i64: 1>, scalar_prefetch = 1 : i64, scratch_operands = 0 : i64, tpu.core_type = #tpu.core_type<tc>, window_params = [{pipeline_mode = #tpu.pipeline_mode<synchronous>, transform_indices = @transform_0, window_bounds = array<i64: 17, 128>}, {transform_indices = @transform_1, window_bounds = array<i64: 8, 128>}]} {
    %c8_i32 = arith.constant 8 : i32
    %0 = arith.muli %arg0, %c8_i32 : i32
    %c0_i32 = arith.constant 0 : i32
    %1 = arith.addi %0, %c0_i32 : i32
    %2 = arith.index_cast %1 : i32 to index
    %3 = memref.load %arg1[%2] : memref<8xi32, #tpu.memory_space<smem>>
    %4 = arith.index_cast %3 : i32 to index
    %c0 = arith.constant 0 : index
    %5 = vector.load %arg2[%4, %c0] : memref<17x128xf32, #tpu.memory_space<vmem>>, vector<1x128xf32>
    %6 = arith.index_cast %c0_i32 : i32 to index
    %c0_0 = arith.constant 0 : index
    %7 = vector.load %arg3[%6, %c0_0] : memref<8x128xf32, #tpu.memory_space<vmem>>, vector<1x128xf32>
    tpu.vector_store %arg3[%6, %c0_0], %5 {strides = array<i32>} : memref<8x128xf32, #tpu.memory_space<vmem>>, vector<1x128xf32>,
    %c1_i32 = arith.constant 1 : i32
    %8 = arith.addi %0, %c1_i32 : i32
    %9 = arith.index_cast %8 : i32 to index
    %10 = memref.load %arg1[%9] : memref<8xi32, #tpu.memory_space<smem>>
    %11 = arith.index_cast %10 : i32 to index
    %c0_1 = arith.constant 0 : index
    %12 = vector.load %arg2[%11, %c0_1] : memref<17x128xf32, #tpu.memory_space<vmem>>, vector<1x128xf32>
    %13 = arith.index_cast %c1_i32 : i32 to index
    %c0_2 = arith.constant 0 : index
    %14 = vector.load %arg3[%13, %c0_2] : memref<8x128xf32, #tpu.memory_space<vmem>>, vector<1x128xf32>
    tpu.vector_store %arg3[%13, %c0_2], %12 {strides = array<i32>} : memref<8x128xf32, #tpu.memory_space<vmem>>, vector<1x128xf32>,
    %c2_i32 = arith.constant 2 : i32
    %15 = arith.addi %0, %c2_i32 : i32
    %16 = arith.index_cast %15 : i32 to index
    %17 = memref.load %arg1[%16] : memref<8xi32, #tpu.memory_space<smem>>
    %18 = arith.index_cast %17 : i32 to index
    %c0_3 = arith.constant 0 : index
    %19 = vector.load %arg2[%18, %c0_3] : memref<17x128xf32, #tpu.memory_space<vmem>>, vector<1x128xf32>
    %20 = arith.index_cast %c2_i32 : i32 to index
    %c0_4 = arith.constant 0 : index
    %21 = vector.load %arg3[%20, %c0_4] : memref<8x128xf32, #tpu.memory_space<vmem>>, vector<1x128xf32>
    tpu.vector_store %arg3[%20, %c0_4], %19 {strides = array<i32>} : memref<8x128xf32, #tpu.memory_space<vmem>>, vector<1x128xf32>,
    %c3_i32 = arith.constant 3 : i32
    %22 = arith.addi %0, %c3_i32 : i32
    %23 = arith.index_cast %22 : i32 to index
    %24 = memref.load %arg1[%23] : memref<8xi32, #tpu.memory_space<smem>>
    %25 = arith.index_cast %24 : i32 to index
    %c0_5 = arith.constant 0 : index
    %26 = vector.load %arg2[%25, %c0_5] : memref<17x128xf32, #tpu.memory_space<vmem>>, vector<1x128xf32>
    %27 = arith.index_cast %c3_i32 : i32 to index
    %c0_6 = arith.constant 0 : index
    %28 = vector.load %arg3[%27, %c0_6] : memref<8x128xf32, #tpu.memory_space<vmem>>, vector<1x128xf32>
    tpu.vector_store %arg3[%27, %c0_6], %26 {strides = array<i32>} : memref<8x128xf32, #tpu.memory_space<vmem>>, vector<1x128xf32>,
    %c4_i32 = arith.constant 4 : i32
    %29 = arith.addi %0, %c4_i32 : i32
    %30 = arith.index_cast %29 : i32 to index
    %31 = memref.load %arg1[%30] : memref<8xi32, #tpu.memory_space<smem>>
    %32 = arith.index_cast %31 : i32 to index
    %c0_7 = arith.constant 0 : index
    %33 = vector.load %arg2[%32, %c0_7] : memref<17x128xf32, #tpu.memory_space<vmem>>, vector<1x128xf32>
    %34 = arith.index_cast %c4_i32 : i32 to index
    %c0_8 = arith.constant 0 : index
    %35 = vector.load %arg3[%34, %c0_8] : memref<8x128xf32, #tpu.memory_space<vmem>>, vector<1x128xf32>
    tpu.vector_store %arg3[%34, %c0_8], %33 {strides = array<i32>} : memref<8x128xf32, #tpu.memory_space<vmem>>, vector<1x128xf32>,
    %c5_i32 = arith.constant 5 : i32
    %36 = arith.addi %0, %c5_i32 : i32
    %37 = arith.index_cast %36 : i32 to index
    %38 = memref.load %arg1[%37] : memref<8xi32, #tpu.memory_space<smem>>
    %39 = arith.index_cast %38 : i32 to index
    %c0_9 = arith.constant 0 : index
    %40 = vector.load %arg2[%39, %c0_9] : memref<17x128xf32, #tpu.memory_space<vmem>>, vector<1x128xf32>
    %41 = arith.index_cast %c5_i32 : i32 to index
    %c0_10 = arith.constant 0 : index
    %42 = vector.load %arg3[%41, %c0_10] : memref<8x128xf32, #tpu.memory_space<vmem>>, vector<1x128xf32>
    tpu.vector_store %arg3[%41, %c0_10], %40 {strides = array<i32>} : memref<8x128xf32, #tpu.memory_space<vmem>>, vector<1x128xf32>,
    %c6_i32 = arith.constant 6 : i32
    %43 = arith.addi %0, %c6_i32 : i32
    %44 = arith.index_cast %43 : i32 to index
    %45 = memref.load %arg1[%44] : memref<8xi32, #tpu.memory_space<smem>>
    %46 = arith.index_cast %45 : i32 to index
    %c0_11 = arith.constant 0 : index
    %47 = vector.load %arg2[%46, %c0_11] : memref<17x128xf32, #tpu.memory_space<vmem>>, vector<1x128xf32>
    %48 = arith.index_cast %c6_i32 : i32 to index
    %c0_12 = arith.constant 0 : index
    %49 = vector.load %arg3[%48, %c0_12] : memref<8x128xf32, #tpu.memory_space<vmem>>, vector<1x128xf32>
    tpu.vector_store %arg3[%48, %c0_12], %47 {strides = array<i32>} : memref<8x128xf32, #tpu.memory_space<vmem>>, vector<1x128xf32>,
    %c7_i32 = arith.constant 7 : i32
    %50 = arith.addi %0, %c7_i32 : i32
    %51 = arith.index_cast %50 : i32 to index
    %52 = memref.load %arg1[%51] : memref<8xi32, #tpu.memory_space<smem>>
    %53 = arith.index_cast %52 : i32 to index
    %c0_13 = arith.constant 0 : index
    %54 = vector.load %arg2[%53, %c0_13] : memref<17x128xf32, #tpu.memory_space<vmem>>, vector<1x128xf32>
    %55 = arith.index_cast %c7_i32 : i32 to index
    %c0_14 = arith.constant 0 : index
    %56 = vector.load %arg3[%55, %c0_14] : memref<8x128xf32, #tpu.memory_space<vmem>>, vector<1x128xf32>
    tpu.vector_store %arg3[%55, %c0_14], %54 {strides = array<i32>} : memref<8x128xf32, #tpu.memory_space<vmem>>, vector<1x128xf32>,
    %c8_i32_15 = arith.constant 8 : i32
    return
  }
  func.func @transform_0(%arg0: i32, %arg1: memref<8xi32, #tpu.memory_space<smem>>) -> (i32, i32) {
    %c0_i32 = arith.constant 0 : i32
    %c0_i32_0 = arith.constant 0 : i32
    %c0_i32_1 = arith.constant 0 : i32
    return %c0_i32, %c0_i32_0 : i32, i32
  }
  func.func @transform_1(%arg0: i32, %arg1: memref<8xi32, #tpu.memory_space<smem>>) -> (i32, i32) {
    %c0_i32 = arith.constant 0 : i32
    %c0_i32_0 = arith.constant 0 : i32
    return %arg0, %c0_i32 : i32, i32
  }
}

</mosaic_0001>

<llo_original>
// kernel: tpu_custom_call.1
$region0: #{tpu_custom_call.1}
  #allocation0 [shape = 'u32[]', space=smem, size = 0x4, offset = 0x4, fixed_abs, tag = 'smem constant byte address 0x4 - core index']
  #allocation1 [shape = 'u32[144,128]{1,0:T(1,128)}', space=vmem, size = 0x12000, scoped, tag = 'internal scratch']
  #allocation2 [shape = 's32[1]{0}', space=sflag, size = 0x4, scoped, tag = 'scoped memory for tpu_custom_call.1']
  #allocation3 [shape = 'u8[512]{0}', space=smem, size = 0x200, scoped, tag = 'prefetched SMEM operand 0']
  %s0 = inlined_call_operand.hbm [shape: s32[8], index: 0, kind: input, shape index: {}]
  %s1 = inlined_call_operand.hbm [shape: f32[17,128], index: 1, kind: input, shape index: {}]
  %s2 = inlined_call_operand.hbm [shape: f32[8,128], index: 2, kind: output, shape index: {}]
  %s3 = sld [smem:[#allocation0]]
  $region18: #{tpu_custom_call.1} parent=0
    _
  %s5 = ssub.s32 1, %s3
  %s6 = scalar_select 0, %s5, %s3
  %8 = dma.hbm_to_smem %s0, 16, [#allocation3], [#allocation2]
  %9 = dma.done [#allocation2], 16
  %10 = sfence
  $region1: #{tpu_custom_call.1} parent=0
    #allocation4 [shape = 'u8[12288]{0}', space=vmem, size = 0x3000, scoped, tag = 'input window, operand 1, single buffered']
    #allocation5 [shape = 's32[1]{0}', space=sflag, size = 0x4, scoped, tag = 'scoped memory for tpu_custom_call.1']
    #allocation6 [shape = 's32[1]{0}', space=sflag, size = 0x4, scoped, tag = 'scoped memory for tpu_custom_call.1']
    #allocation7 [shape = 'u8[4096]{0}', space=vmem, size = 0x1000, scoped, tag = 'output window, operand 0, single buffered']
    %11 = vsyncpa [#allocation5], 0
    %12 = vsyncpa [#allocation6], 0
    // Predicated region
    $region2: #{tpu_custom_call.1} parent=1 // pred_check
      _
    $region3: #{tpu_custom_call.1} parent=1 // pred_check_branch
      %14 = sbr.rel (0) target = $region5
    $region4: #{tpu_custom_call.1} parent=1 // pred_region
      %s16 = ssub.s32 384, 384
      %17 = vsyncadd [#allocation5], %s16
      %s18 = sshll.u32 [#allocation4], 4
      %s19 = int_to_ptr.vmem [resolvable:$true] %s18
      %24 = dma.hbm_to_vmem [thread:$0]  %s1, 384, %s19, [#allocation5], 128, 128, 8
    $region5: #{tpu_custom_call.1} parent=1 // pred_fallthru
      _
    // Predicated region
    $region6: #{tpu_custom_call.1} parent=1 // pred_check
      _
    $region7: #{tpu_custom_call.1} parent=1 // pred_check_branch
      %26 = sbr.rel (0) target = $region9
    $region8: #{tpu_custom_call.1} parent=1 // pred_region
      %27 = dma.done [#allocation5], 384
    $region9: #{tpu_custom_call.1} parent=1 // pred_fallthru
      _
    %s28 = smul.u32 0, 8
    %s29 = sld [smem:[#allocation3 + %s28]]
    %s30 = scalar_lea.vmem [#allocation4], %s29
    %v31 = vld [vmem:[%s30] sm:$0x1]
    %32 = vst [vmem:[#allocation7] sm:$0x1] %v31
    %s33 = sadd.s32 %s28, 1
    %s34 = sld [smem:[#allocation3 + %s33]]
    %s35 = scalar_lea.vmem [#allocation4], %s34
    %v36 = vld [vmem:[%s35] sm:$0x1]
    %37 = vst [vmem:[#allocation7 + $0x1] sm:$0x1] %v36
    %s38 = sadd.s32 %s28, 2
    %s39 = sld [smem:[#allocation3 + %s38]]
    %s40 = scalar_lea.vmem [#allocation4], %s39
    %v41 = vld [vmem:[%s40] sm:$0x1]
    %42 = vst [vmem:[#allocation7 + $0x2] sm:$0x1] %v41
    %s43 = sadd.s32 %s28, 3
    %s44 = sld [smem:[#allocation3 + %s43]]
    %s45 = scalar_lea.vmem [#allocation4], %s44
    %v46 = vld [vmem:[%s45] sm:$0x1]
    %47 = vst [vmem:[#allocation7 + $0x3] sm:$0x1] %v46
    %s48 = sadd.s32 %s28, 4
    %s49 = sld [smem:[#allocation3 + %s48]]
    %s50 = scalar_lea.vmem [#allocation4], %s49
    %v51 = vld [vmem:[%s50] sm:$0x1]
    %52 = vst [vmem:[#allocation7 + $0x4] sm:$0x1] %v51
    %s53 = sadd.s32 %s28, 5
    %s54 = sld [smem:[#allocation3 + %s53]]
    %s55 = scalar_lea.vmem [#allocation4], %s54
    %v56 = vld [vmem:[%s55] sm:$0x1]
    %57 = vst [vmem:[#allocation7 + $0x5] sm:$0x1] %v56
    %s58 = sadd.s32 %s28, 6
    %s59 = sld [smem:[#allocation3 + %s58]]
    %s60 = scalar_lea.vmem [#allocation4], %s59
    %v61 = vld [vmem:[%s60] sm:$0x1]
    %62 = vst [vmem:[#allocation7 + $0x6] sm:$0x1] %v61
    %s63 = sadd.s32 %s28, 7
    %s64 = sld [smem:[#allocation3 + %s63]]
    %s65 = scalar_lea.vmem [#allocation4], %s64
    %v66 = vld [vmem:[%s65] sm:$0x1]
    %67 = vst [vmem:[#allocation7 + $0x7] sm:$0x1] %v66
    // Predicated region
    $region10: #{tpu_custom_call.1} parent=1 // pred_check
      _
    $region11: #{tpu_custom_call.1} parent=1 // pred_check_branch
      %69 = sbr.rel (0) target = $region13
    $region12: #{tpu_custom_call.1} parent=1 // pred_region
      %s71 = ssub.s32 128, 128
      %72 = vsyncadd [#allocation6], %s71
      %s74 = sshll.u32 [#allocation7], 4
      %s75 = int_to_ptr.vmem [resolvable:$true] %s74
      %77 = dma.vmem_to_hbm [thread:$0]  %s75, 128, %s2, [#allocation6]
    $region13: #{tpu_custom_call.1} parent=1 // pred_fallthru
      _
    // Predicated region
    $region14: #{tpu_custom_call.1} parent=1 // pred_check
      _
    $region15: #{tpu_custom_call.1} parent=1 // pred_check_branch
      %79 = sbr.rel (0) target = $region17
    $region16: #{tpu_custom_call.1} parent=1 // pred_region
      %80 = dma.done [#allocation6], 128
    $region17: #{tpu_custom_call.1} parent=1 // pred_fallthru
      _
    %81 = vsyncpa [#allocation5], 1
    %82 = vsyncpa [#allocation6], 1

</llo_original>
